<compile_context>
chip_gen: v7x
topology: tpu7x:2x2x1
jax: 0.10.0
libtpu: 0.0.40
codegen_flags: <defaults>
</compile_context>

<pallas_src>
import functools

import jax
import jax.numpy as jnp
from jax.experimental import pallas as pl
from jax.experimental.pallas import tpu as pltpu


# ----------------------------- Pallas kernel ---------------------------------
def _conv_bn_kernel(*refs, relu, res_mode):
    """One output tile: [TILE_HW, K*Cin] @ [K*Cin, Cout_pad] + bias (+ residual) (+ ReLU)."""
    if res_mode == "proj":
        p_ref, w_ref, b_ref, r_ref, rw_ref, rb_ref, o_ref = refs
    elif res_mode == "identity":
        p_ref, w_ref, b_ref, r_ref, o_ref = refs
    else:
        p_ref, w_ref, b_ref, o_ref = refs

    # Single MXU matmul, bf16 inputs, f32 accumulation.
    y = jnp.dot(p_ref[0], w_ref[...], preferred_element_type=jnp.float32)
    y = y + b_ref[...]                                   # BN scale already folded into weights

    if res_mode == "proj":
        # fused shortcut: 1x1 conv (+ folded BN) on the stride-subsampled input
        y = y + jnp.dot(r_ref[0], rw_ref[...], preferred_element_type=jnp.float32)
        y = y + rb_ref[...]
    elif res_mode == "identity":
        y = y + r_ref[0].astype(jnp.float32)

    if relu:
        y = jnp.maximum(y, 0.0)
    o_ref[0] = y.astype(o_ref.dtype)


# ------------------------------ helpers ---------------------------------------
def _round_up(x, m):
    return (x + m - 1) // m * m


def _pad_last(a, to):
    extra = to - a.shape[-1]
    if extra == 0:
        return a
    return jnp.pad(a, [(0, 0)] * (a.ndim - 1) + [(0, extra)])


def _im2col(x, ksize, stride, pad):
    """x: [N,H,W,C] -> patches [N, Ho*Wo, K*C] with (kh, kw, c) contraction order."""
    N, H, W, C = x.shape
    Ho = (H + 2 * pad - ksize) // stride + 1
    Wo = (W + 2 * pad - ksize) // stride + 1
    xp = jnp.pad(x, ((0, 0), (pad, pad), (pad, pad), (0, 0))) if pad else x
    cols = [xp[:, kh:kh + (Ho - 1) * stride + 1:stride,
                  kw:kw + (Wo - 1) * stride + 1:stride, :]
            for kh in range(ksize) for kw in range(ksize)]
    patches = jnp.stack(cols, axis=3)                    # [N, Ho, Wo, K, C]
    return patches.reshape(N, Ho * Wo, ksize * ksize * C), Ho, Wo


def fold_bn(gamma, beta, mean, var, eps=1e-5):
    scale = gamma / jnp.sqrt(var + eps)
    bias = beta - mean * scale
    return scale, bias


# ------------------------------ wrapper ----------------------------------------
def conv_bn(x, w_folded, bias, *, stride, ksize, relu,
            res_mode=None, res_x=None, res_w=None, res_b=None,
            compute_dtype=jnp.bfloat16, tile_hw=512):
    """x: [N,H,W,Cin] NHWC. w_folded: [k,k,Cin,Cout] with BN scale already folded in.
    res_mode: None | 'identity' (res_x: [N,Ho,Wo,Cout]) | 'proj' (res_x: [N,Ho,Wo,Cr],
    res_w: [Cr,Cout], res_b: [Cout]). Returns [N,Ho,Wo,Cout]."""
    N, H, W, Cin = x.shape
    Cout = w_folded.shape[-1]
    pad = (ksize - 1) // 2
    K = ksize * ksize
    KC = K * Cin
    COP = _round_up(Cout, 128)                           # lane-dense output channels

    patches, Ho, Wo = _im2col(x, ksize, stride, pad)     # [N, HW, KC]
    HW = Ho * Wo
    # spatial tile: multiple of 8 sublanes, capped so double-buffered tiles fit v7x VMEM easily
    TILE = tile_hw if HW >= tile_hw else _round_up(HW, 8)
    HWp = _round_up(HW, TILE)

    patches = patches.astype(compute_dtype)
    if HWp != HW:
        patches = jnp.pad(patches, ((0, 0), (0, HWp - HW), (0, 0)))

    wk = _pad_last(w_folded.reshape(KC, Cout), COP).astype(compute_dtype)   # [KC, COP]
    b2 = _pad_last(bias.reshape(1, Cout), COP).astype(jnp.float32)          # [1, COP]

    args = [patches, wk, b2]
    in_specs = [
        pl.BlockSpec((1, TILE, KC), lambda n, t: (n, t, 0)),
        pl.BlockSpec((KC, COP), lambda n, t: (0, 0)),
        pl.BlockSpec((1, COP), lambda n, t: (0, 0)),
    ]

    if res_mode == "identity":
        r = _pad_last(res_x.reshape(N, HW, Cout), COP)
        if HWp != HW:
            r = jnp.pad(r, ((0, 0), (0, HWp - HW), (0, 0)))
        args.append(r)
        in_specs.append(pl.BlockSpec((1, TILE, COP), lambda n, t: (n, t, 0)))
    elif res_mode == "proj":
        Cr = res_x.shape[-1]
        r = res_x.reshape(N, HW, Cr).astype(compute_dtype)
        if HWp != HW:
            r = jnp.pad(r, ((0, 0), (0, HWp - HW), (0, 0)))
        rw = _pad_last(res_w, COP).astype(compute_dtype)                     # [Cr, COP]
        rb = _pad_last(res_b.reshape(1, Cout), COP).astype(jnp.float32)      # [1, COP]
        args += [r, rw, rb]
        in_specs += [
            pl.BlockSpec((1, TILE, Cr), lambda n, t: (n, t, 0)),
            pl.BlockSpec((Cr, COP), lambda n, t: (0, 0)),
            pl.BlockSpec((1, COP), lambda n, t: (0, 0)),
        ]

    kernel = functools.partial(_conv_bn_kernel, relu=relu, res_mode=res_mode)
    out = pl.pallas_call(
        kernel,
        out_shape=jax.ShapeDtypeStruct((N, HWp, COP), x.dtype),
        grid=(N, HWp // TILE),
        in_specs=in_specs,
        out_specs=pl.BlockSpec((1, TILE, COP), lambda n, t: (n, t, 0)),
        compiler_params=pltpu.CompilerParams(
            dimension_semantics=("parallel", "parallel"),
            vmem_limit_bytes=64 * 1024 * 1024),
    )(*args)
    return out[:, :HW, :Cout].reshape(N, Ho, Wo, Cout)


def basic_block(x_nhwc, params, stride):
    """Pallas BasicBlock forward (eval-mode BN). x_nhwc: [N,H,W,Cin]."""
    Cin = x_nhwc.shape[-1]
    Cout = params["w1"].shape[-1]

    s1, b1 = fold_bn(*params["bn1"])
    s2, b2 = fold_bn(*params["bn2"])
    w1f = params["w1"] * s1                              # fold BN scale into weights (f32)
    w2f = params["w2"] * s2

    # residual branch, first conv: conv3x3(stride) + BN + ReLU  (one pallas_call)
    y1 = conv_bn(x_nhwc, w1f, b1, stride=stride, ksize=3, relu=True)

    # second conv: conv3x3 + BN, with the shortcut branch fused into the same kernel
    if stride != 1 or Cin != Cout:
        ss, bs = fold_bn(*params["bns"])
        rw = params["ws"][0, 0] * ss                     # [Cin, Cout], BN-scale folded
        res_x = x_nhwc[:, ::stride, ::stride, :]         # 1x1 stride-s conv input = subsampled x
        y2 = conv_bn(y1, w2f, b2, stride=1, ksize=3, relu=True,
                     res_mode="proj", res_x=res_x, res_w=rw, res_b=bs)
    else:
        y2 = conv_bn(y1, w2f, b2, stride=1, ksize=3, relu=True,
                     res_mode="identity", res_x=x_nhwc)
    return y2


# ----------------------------- reference (plain JAX, f32) ----------------------
def _conv_ref(x, w, stride, pad):
    return jax.lax.conv_general_dilated(
        x, w, (stride, stride), [(pad, pad), (pad, pad)],
        dimension_numbers=("NHWC", "HWIO", "NHWC"))


def basic_block_ref(x, params, stride):
    Cin = x.shape[-1]
    Cout = params["w1"].shape[-1]
    s1, b1 = fold_bn(*params["bn1"])
    s2, b2 = fold_bn(*params["bn2"])
    y1 = jnp.maximum(_conv_ref(x, params["w1"], stride, 1) * s1 + b1, 0.0)
    if stride != 1 or Cin != Cout:
        ss, bs = fold_bn(*params["bns"])
        sc = _conv_ref(x, params["ws"], stride, 0) * ss + bs
    else:
        sc = x
    return jnp.maximum(_conv_ref(y1, params["w2"], 1, 1) * s2 + b2 + sc, 0.0)


# ------------------------------------ main ------------------------------------
if __name__ == "__main__":
    N, Cin, Cout, H, W, stride = 2, 4, 8, 16, 16, 2

    key = jax.random.PRNGKey(0)
    ks = jax.random.split(key, 12)

    def bn_params(k):
        k1, k2, k3, k4 = jax.random.split(k, 4)
        gamma = 1.0 + 0.1 * jax.random.normal(k1, (Cout,), jnp.float32)
        beta = 0.1 * jax.random.normal(k2, (Cout,), jnp.float32)
        mean = 0.1 * jax.random.normal(k3, (Cout,), jnp.float32)
        var = jax.random.uniform(k4, (Cout,), jnp.float32, 0.5, 1.5)
        return (gamma, beta, mean, var)

    params = {
        "w1": 0.1 * jax.random.normal(ks[0], (3, 3, Cin, Cout), jnp.float32),
        "bn1": bn_params(ks[1]),
        "w2": 0.1 * jax.random.normal(ks[2], (3, 3, Cout, Cout), jnp.float32),
        "bn2": bn_params(ks[3]),
        "ws": 0.1 * jax.random.normal(ks[4], (1, 1, Cin, Cout), jnp.float32),
        "bns": bn_params(ks[5]),
    }

    # PyTorch module takes NCHW; convert once to NHWC for the kernel.
    x_nchw = jax.random.normal(ks[6], (N, Cin, H, W), jnp.float32)
    x_nhwc = jnp.transpose(x_nchw, (0, 2, 3, 1))

    out = jax.block_until_ready(basic_block(x_nhwc, params, stride))
    ref = jax.block_until_ready(basic_block_ref(x_nhwc, params, stride))

    assert out.shape == (N, H // stride, W // stride, Cout), out.shape
    # bf16 MXU inputs with f32 accumulation vs f32 reference -> loosened tolerance.
    max_err = float(jnp.max(jnp.abs(out - ref)))
    assert max_err < 5e-2, max_err
    print("KERNEL_OK")
</pallas_src>

<mosaic_0001>
module attributes {stable_mosaic.version = 11 : i64} {
  func.func @_conv_bn_kernel(%arg0: i32, %arg1: i32, %arg2: memref<1x64x36xbf16, #tpu.memory_space<vmem>>, %arg3: memref<36x128xbf16, #tpu.memory_space<vmem>>, %arg4: memref<1x128xf32, #tpu.memory_space<vmem>>, %arg5: memref<1x64x128xf32, #tpu.memory_space<vmem>>) attributes {dimension_semantics = [#tpu.dimension_semantics<parallel>, #tpu.dimension_semantics<parallel>], iteration_bounds = array<i64: 2, 1>, scalar_prefetch = 0 : i64, scratch_operands = 0 : i64, tpu.core_type = #tpu.core_type<tc>, window_params = [{transform_indices = @transform_0, window_bounds = array<i64: 1, 64, 36>}, {pipeline_mode = #tpu.pipeline_mode<synchronous>, transform_indices = @transform_1, window_bounds = array<i64: 36, 128>}, {pipeline_mode = #tpu.pipeline_mode<synchronous>, transform_indices = @transform_2, window_bounds = array<i64: 1, 128>}, {transform_indices = @transform_3, window_bounds = array<i64: 1, 64, 128>}]} {
    %c0 = arith.constant 0 : index
    %c0_0 = arith.constant 0 : index
    %c0_1 = arith.constant 0 : index
    %0 = vector.load %arg2[%c0, %c0_0, %c0_1] : memref<1x64x36xbf16, #tpu.memory_space<vmem>>, vector<1x64x36xbf16>
    %1 = vector.shape_cast %0 : vector<1x64x36xbf16> to vector<64x36xbf16>
    %c0_2 = arith.constant 0 : index
    %c0_3 = arith.constant 0 : index
    %2 = vector.load %arg3[%c0_2, %c0_3] : memref<36x128xbf16, #tpu.memory_space<vmem>>, vector<36x128xbf16>
    %cst = arith.constant dense<0.000000e+00> : vector<64x128xf32>
    %3 = tpu.matmul %1, %2, %cst {dimension_numbers = #tpu.dot_dimension_numbers<[1], [0], [0], [1], [0, 0, 1, 1], [], []>} : vector<64x36xbf16>, vector<36x128xbf16>, vector<64x128xf32> -> vector<64x128xf32>
    %c0_4 = arith.constant 0 : index
    %c0_5 = arith.constant 0 : index
    %4 = vector.load %arg4[%c0_4, %c0_5] : memref<1x128xf32, #tpu.memory_space<vmem>>, vector<1x128xf32>
    %5 = vector.broadcast %4 : vector<1x128xf32> to vector<64x128xf32>
    %6 = arith.addf %3, %5 : vector<64x128xf32>
    %cst_6 = arith.constant 0.000000e+00 : f32
    %7 = vector.broadcast %cst_6 : f32 to vector<64x128xf32>
    %8 = arith.maximumf %6, %7 : vector<64x128xf32>
    %c0_7 = arith.constant 0 : index
    %c0_8 = arith.constant 0 : index
    %c0_9 = arith.constant 0 : index
    %9 = vector.load %arg5[%c0_7, %c0_8, %c0_9] : memref<1x64x128xf32, #tpu.memory_space<vmem>>, vector<1x64x128xf32>
    %10 = vector.shape_cast %9 : vector<1x64x128xf32> to vector<64x128xf32>
    %11 = vector.shape_cast %8 : vector<64x128xf32> to vector<1x64x128xf32>
    tpu.vector_store %arg5[%c0_7, %c0_8, %c0_9], %11 {strides = array<i32>} : memref<1x64x128xf32, #tpu.memory_space<vmem>>, vector<1x64x128xf32>,
    return
  }
  func.func @transform_0(%arg0: i32, %arg1: i32) -> (i32, i32, i32) {
    %c0_i32 = arith.constant 0 : i32
    %c0_i32_0 = arith.constant 0 : i32
    return %arg0, %arg1, %c0_i32 : i32, i32, i32
  }
  func.func @transform_1(%arg0: i32, %arg1: i32) -> (i32, i32) {
    %c0_i32 = arith.constant 0 : i32
    %c0_i32_0 = arith.constant 0 : i32
    %c0_i32_1 = arith.constant 0 : i32
    return %c0_i32, %c0_i32_0 : i32, i32
  }
  func.func @transform_2(%arg0: i32, %arg1: i32) -> (i32, i32) {
    %c0_i32 = arith.constant 0 : i32
    %c0_i32_0 = arith.constant 0 : i32
    %c0_i32_1 = arith.constant 0 : i32
    return %c0_i32, %c0_i32_0 : i32, i32
  }
  func.func @transform_3(%arg0: i32, %arg1: i32) -> (i32, i32, i32) {
    %c0_i32 = arith.constant 0 : i32
    %c0_i32_0 = arith.constant 0 : i32
    return %arg0, %arg1, %c0_i32 : i32, i32, i32
  }
}

</mosaic_0001>

<llo_original>
// kernel: tpu_custom_call.1
$region0: #{tpu_custom_call.1}
  #allocation0 [shape = 'u32[]', space=smem, size = 0x4, offset = 0x4, fixed_abs, tag = 'smem constant byte address 0x4 - core index']
  #allocation1 [shape = 'u32[144,128]{1,0:T(1,128)}', space=vmem, size = 0x12000, scoped, tag = 'internal scratch']
  %s0 = inlined_call_operand.hbm [shape: bf16[2,64,36], index: 0, kind: input, shape index: {}]
  %s1 = inlined_call_operand.hbm [shape: bf16[36,128], index: 1, kind: input, shape index: {}]
  %s2 = inlined_call_operand.hbm [shape: f32[1,128], index: 2, kind: input, shape index: {}]
  %s3 = inlined_call_operand.hbm [shape: f32[2,64,128], index: 3, kind: output, shape index: {}]
  %s4 = sld [smem:[#allocation0]]
  $region57: #{tpu_custom_call.1} parent=0
    _
  %s6 = ssub.s32 1, %s4
  %s7 = scalar_select 0, %s6, %s4
  $region1: #{tpu_custom_call.1} parent=0
    #allocation2 [shape = 'u8[32768]{0}', space=vmem, size = 0x8000, scoped, tag = 'input window, operand 0']
    #allocation3 [shape = 's32[2]{0}', space=sflag, size = 0x8, scoped, tag = 'scoped memory for tpu_custom_call.1']
    #allocation4 [shape = 's32[2]{0}', space=sflag, size = 0x8, scoped, tag = 'scoped memory for tpu_custom_call.1']
    #allocation5 [shape = 'u8[10240]{0}', space=vmem, size = 0x2800, scoped, tag = 'input window, operand 1, single buffered']
    #allocation6 [shape = 's32[1]{0}', space=sflag, size = 0x4, scoped, tag = 'scoped memory for tpu_custom_call.1']
    #allocation7 [shape = 'u8[512]{0}', space=vmem, size = 0x400, scoped, tag = 'input window, operand 2, single buffered']
    #allocation8 [shape = 'u8[65536]{0}', space=vmem, size = 0x10000, scoped, tag = 'output window, operand 0']
    %8 = vsyncpa [#allocation3], 0
    %s9 = scalar_lea.sflag [#allocation3], 1
    %10 = vsyncpa %s9, 0
    %11 = vsyncpa [#allocation6], 0
    %12 = vsyncpa [#allocation4], 0
    %s13 = scalar_lea.sflag [#allocation4], 1
    %14 = vsyncpa %s13, 0
    loop: start=0, step=1, limit=4
    $region2: #{tpu_custom_call.1} parent=1 // loop_pre_header
      _
    $region3: #{tpu_custom_call.1} parent=1 // loop_header
      %s16 = sphi 0, %s20
      %p17 = scmp.ge.s32.totalorder %s16, 4
      %s23 = sphi 0, %s35
      %s24 = sphi 0, %s31
      %s25 = sphi 0, %s23
      %s26 = sphi 0, %s24
      %s27 = sphi 0, %s25
      %s28 = sphi 0, %s26
      %s40 = sphi 0, %s42
      %s43 = sphi 0, %s40
      %s44 = sphi 0, %s43
      %s60 = sphi 0, %s44
      %s64 = sphi 0, %s64
      %s66 = sphi 0, %s64
      %s67 = sphi 0, %s66
      %s81 = sphi 0, %s67
      %s85 = sphi 0, %s85
      %s87 = sphi 0, %s85
      %s88 = sphi 0, %s87
      %s102 = sphi 0, %s88
      %s110 = sphi 0, %s112
      %s113 = sphi 0, %s110
      %s114 = sphi 0, %s113
      %s130 = sphi 0, %s114
    $region4: #{tpu_custom_call.1} parent=1 // loop_header_branch
      %19 = sbr.rel (%p17) target = $region8
    $region5: #{tpu_custom_call.1} parent=1 // loop_body
      %s21 = ssub.s32 %s16, 1
      %s22 = ssub.s32 %s16, 2
      %s29 = sadd.s32 1, %s24
      %p30 = scmp.ge.s32.totalorder %s29, 1
      %s31 = scalar_select %p30, 0, %s29
      %s32 = sadd.s32 1, %s23
      %s33 = scalar_select %p30, %s32, %s23
      %p34 = scmp.ge.s32.totalorder %s33, 2
      %s35 = scalar_select %p34, 0, %s33
      %s36 = ssub.s32 %s23, %s35
      %s37 = ssub.s32 %s24, %s31
      %s38 = sor.u32 %s36, %s37
      %p39 = scmp.eq.s32.totalorder %s38, 0
      %s41 = sadd.s32 %s40, 1
      %s42 = scalar_select %p39, %s40, %s41
      %p45 = pneg %p39
      %p46 = scmp.eq.s32.totalorder %s16, 1
      %p47 = por %p45, %p46
      %p48 = scmp.ne.s32.totalorder %s40, %s43
      %p49 = scmp.eq.s32.totalorder %s16, 0
      %p50 = por %p48, %p49
      %p51 = scmp.ne.s32.totalorder %s40, %s43
      %p52 = scmp.eq.s32.totalorder %s21, 1
      %p53 = por %p51, %p52
      %p54 = scmp.ne.s32.totalorder %s43, %s44
      %p55 = scmp.eq.s32.totalorder %s21, 0
      %p56 = por %p54, %p55
      %p57 = scmp.ne.s32.totalorder %s43, %s44
      %p58 = scmp.eq.s32.totalorder %s22, 1
      %p59 = por %p57, %p58
      %p61 = scmp.ne.s32.totalorder %s44, %s60
      %p62 = scmp.eq.s32.totalorder %s22, 0
      %p63 = por %p61, %p62
      %s65 = sadd.s32 %s64, 1
      %p68 = scmp.eq.s32.totalorder %s16, 1
      %p69 = scmp.ne.s32.totalorder %s64, %s66
      %p70 = scmp.eq.s32.totalorder %s16, 0
      %p71 = por %p69, %p70
      %p72 = scmp.ne.s32.totalorder %s64, %s66
      %p73 = scmp.eq.s32.totalorder %s21, 1
      %p74 = por %p72, %p73
      %p75 = scmp.ne.s32.totalorder %s66, %s67
      %p76 = scmp.eq.s32.totalorder %s21, 0
      %p77 = por %p75, %p76
      %p78 = scmp.ne.s32.totalorder %s66, %s67
      %p79 = scmp.eq.s32.totalorder %s22, 1
      %p80 = por %p78, %p79
      %p82 = scmp.ne.s32.totalorder %s67, %s81
      %p83 = scmp.eq.s32.totalorder %s22, 0
      %p84 = por %p82, %p83
      %s86 = sadd.s32 %s85, 1
      %p89 = scmp.eq.s32.totalorder %s16, 1
      %p90 = scmp.ne.s32.totalorder %s85, %s87
      %p91 = scmp.eq.s32.totalorder %s16, 0
      %p92 = por %p90, %p91
      %p93 = scmp.ne.s32.totalorder %s85, %s87
      %p94 = scmp.eq.s32.totalorder %s21, 1
      %p95 = por %p93, %p94
      %p96 = scmp.ne.s32.totalorder %s87, %s88
      %p97 = scmp.eq.s32.totalorder %s21, 0
      %p98 = por %p96, %p97
      %p99 = scmp.ne.s32.totalorder %s87, %s88
      %p100 = scmp.eq.s32.totalorder %s22, 1
      %p101 = por %p99, %p100
      %p103 = scmp.ne.s32.totalorder %s88, %s102
      %p104 = scmp.eq.s32.totalorder %s22, 0
      %p105 = por %p103, %p104
      %s106 = ssub.s32 %s23, %s35
      %s107 = ssub.s32 %s24, %s31
      %s108 = sor.u32 %s106, %s107
      %p109 = scmp.eq.s32.totalorder %s108, 0
      %s111 = sadd.s32 %s110, 1
      %s112 = scalar_select %p109, %s110, %s111
      %p115 = pneg %p109
      %p116 = scmp.eq.s32.totalorder %s16, 1
      %p117 = por %p115, %p116
      %p118 = scmp.ne.s32.totalorder %s110, %s113
      %p119 = scmp.eq.s32.totalorder %s16, 0
      %p120 = por %p118, %p119
      %p121 = scmp.ne.s32.totalorder %s110, %s113
      %p122 = scmp.eq.s32.totalorder %s21, 1
      %p123 = por %p121, %p122
      %p124 = scmp.ne.s32.totalorder %s113, %s114
      %p125 = scmp.eq.s32.totalorder %s21, 0
      %p126 = por %p124, %p125
      %p127 = scmp.ne.s32.totalorder %s113, %s114
      %p128 = scmp.eq.s32.totalorder %s22, 1
      %p129 = por %p127, %p128
      %p131 = scmp.ne.s32.totalorder %s114, %s130
      %p132 = scmp.eq.s32.totalorder %s22, 0
      %p133 = por %p131, %p132
      %p134 = scmp.le.s32.totalorder 1, %s16
      %p135 = scmp.lt.s32.totalorder %s16, 3
      %p136 = pnand %p134, %p135
      %p137 = pneg %p136
      // Predicated region
      $region9: #{tpu_custom_call.1} parent=5 // pred_check
        _
      $region10: #{tpu_custom_call.1} parent=5 // pred_check_branch
        %139 = sbr.rel (%p136) target = $region12
      $region11: #{tpu_custom_call.1} parent=5 // pred_region
        %s140 = ssub.s32 %s16, 1
        // Predicated region
        $region13: #{tpu_custom_call.1} parent=11 // pred_check
          %p141 = pneg %p77
        $region14: #{tpu_custom_call.1} parent=11 // pred_check_branch
          %143 = sbr.rel (%p141) target = $region16
        $region15: #{tpu_custom_call.1} parent=11 // pred_region
          %s145 = ssub.s32 320, 320
          %146 = vsyncadd [#allocation6], %s145
          %s147 = sshll.u32 [#allocation5], 4
          %s148 = int_to_ptr.vmem [resolvable:$true] %s147
          %153 = dma.hbm_to_vmem [thread:$0]  %s1, 320, %s148, [#allocation6], 64, 64, 4
        $region16: #{tpu_custom_call.1} parent=11 // pred_fallthru
          _
        // Predicated region
        $region17: #{tpu_custom_call.1} parent=11 // pred_check
          %p154 = pneg %p98
        $region18: #{tpu_custom_call.1} parent=11 // pred_check_branch
          %156 = sbr.rel (%p154) target = $region20
        $region19: #{tpu_custom_call.1} parent=11 // pred_region
          %s158 = ssub.s32 16, 16
          %159 = vsyncadd [#allocation6], %s158
          %s161 = sshll.u32 [#allocation7], 4
          %s162 = int_to_ptr.vmem [resolvable:$true] %s161
          %164 = dma.hbm_to_vmem [thread:$0]  %s2, 16, %s162, [#allocation6]
        $region20: #{tpu_custom_call.1} parent=11 // pred_fallthru
          _
      $region12: #{tpu_custom_call.1} parent=5 // pred_fallthru
        _
      %p165 = scmp.lt.s32.totalorder %s16, 2
      // Predicated region
      $region21: #{tpu_custom_call.1} parent=5 // pred_check
        %p166 = pneg %p165
      $region22: #{tpu_custom_call.1} parent=5 // pred_check_branch
        %168 = sbr.rel (%p166) target = $region24
      $region23: #{tpu_custom_call.1} parent=5 // pred_region
        // Predicated region
        $region25: #{tpu_custom_call.1} parent=23 // pred_check
          %p169 = pneg %p50
        $region26: #{tpu_custom_call.1} parent=23 // pred_check_branch
          %171 = sbr.rel (%p169) target = $region28
        $region27: #{tpu_custom_call.1} parent=23 // pred_region
          %s172 = sand.u32 %s40, 1
          %s173 = scalar_lea.sflag [#allocation3], %s172
          %s174 = sand.u32 %s40, 1
          %s175 = smul.addr %s174, 32
          %s176 = scalar_lea.vmem [#allocation2], %s175
          %s177 = smul.u32 8, %s24
          %s179 = ssub.s32 512, 512
          %180 = vsyncadd %s173, %s179
          %s181 = smul.addr %s23, 8
          %s182 = sadd.s32 %s177, %s181
          %s183 = smul.addr %s182, 64
          %s184 = scalar_lea.hbm %s0, %s183
          %s185 = sshll.u32 %s176, 4
          %s186 = int_to_ptr.vmem [resolvable:$true] %s185
          %191 = dma.hbm_to_vmem [thread:$0]  %s184, 512, %s186, %s173, 64, 64, 4
        $region28: #{tpu_custom_call.1} parent=23 // pred_fallthru
          _
      $region24: #{tpu_custom_call.1} parent=5 // pred_fallthru
        _
      %p192 = scmp.le.s32.totalorder 1, %s16
      %p193 = scmp.lt.s32.totalorder %s16, 3
      %p194 = pnand %p192, %p193
      %p195 = pneg %p194
      // Predicated region
      $region29: #{tpu_custom_call.1} parent=5 // pred_check
        _
      $region30: #{tpu_custom_call.1} parent=5 // pred_check_branch
        %197 = sbr.rel (%p194) target = $region32
      $region31: #{tpu_custom_call.1} parent=5 // pred_region
        %s198 = ssub.s32 %s16, 1
        %s199 = sand.u32 %s43, 1
        %s200 = scalar_lea.sflag [#allocation3], %s199
        %s201 = sand.u32 %s43, 1
        %s202 = smul.addr %s201, 32
        %s203 = scalar_lea.vmem [#allocation2], %s202
        // Predicated region
        $region33: #{tpu_custom_call.1} parent=31 // pred_check
          %p204 = pneg %p56
        $region34: #{tpu_custom_call.1} parent=31 // pred_check_branch
          %206 = sbr.rel (%p204) target = $region36
        $region35: #{tpu_custom_call.1} parent=31 // pred_region
          %207 = dma.done %s200, 512
        $region36: #{tpu_custom_call.1} parent=31 // pred_fallthru
          _
        // Predicated region
        $region37: #{tpu_custom_call.1} parent=31 // pred_check
          %p208 = pneg %p77
        $region38: #{tpu_custom_call.1} parent=31 // pred_check_branch
          %210 = sbr.rel (%p208) target = $region40
        $region39: #{tpu_custom_call.1} parent=31 // pred_region
          %211 = dma.done [#allocation6], 320
        $region40: #{tpu_custom_call.1} parent=31 // pred_fallthru
          _
        // Predicated region
        $region41: #{tpu_custom_call.1} parent=31 // pred_check
          %p212 = pneg %p98
        $region42: #{tpu_custom_call.1} parent=31 // pred_check_branch
          %214 = sbr.rel (%p212) target = $region44
        $region43: #{tpu_custom_call.1} parent=31 // pred_region
          %215 = dma.done [#allocation6], 16
        $region44: #{tpu_custom_call.1} parent=31 // pred_fallthru
          _
        %s216 = sand.u32 %s43, 1
        %s217 = scalar_lea.sflag [#allocation3], %s216
        %s218 = sand.u32 %s43, 1
        %s219 = smul.addr %s218, 32
        %s220 = scalar_lea.vmem [#allocation2], %s219
        %p221 = pneg %p56
        %p222 = pneg %p53
        %p223 = pneg %p77
        %p224 = pneg %p74
        %p225 = pneg %p98
        %p226 = pneg %p95
        %p227 = pneg %p126
        %p228 = pneg %p123
        %s229 = sand.u32 %s113, 1
        %s230 = scalar_lea.sflag [#allocation4], %s229
        %s231 = sand.u32 %s113, 1
        %s232 = smul.addr %s231, 64
        %s233 = scalar_lea.vmem [#allocation8], %s232
        %s234 = smul.u32 8, %s26
        %s235 = smul.u32 8, %s26
        %v237 = vld [vmem:[%s203] sm:$0xf]
        %v238 = vld [vmem:[%s203 + $0x4] sm:$0xf]
        %v239 = vld [vmem:[%s203 + $0x8] sm:$0xf]
        %v240 = vld [vmem:[%s203 + $0xc] sm:$0xf]
        %v241 = vld [vmem:[%s203 + $0x10] sm:$0xf]
        %v242 = vld [vmem:[%s203 + $0x14] sm:$0xf]
        %v243 = vld [vmem:[%s203 + $0x18] sm:$0xf]
        %v244 = vld [vmem:[%s203 + $0x1c] sm:$0xf]
        %v245 = vld [vmem:[#allocation5] sm:$0xf]
        %v246 = vld [vmem:[#allocation5 + $0x4] sm:$0xf]
        %v247 = vld [vmem:[#allocation5 + $0x8] sm:$0xf]
        %v248 = vld [vmem:[#allocation5 + $0xc] sm:$0xf]
        %v249 = vld [vmem:[#allocation5 + $0x10] sm:$0x3]
        %v250 = vld [vmem:[#allocation7] sm:$0x1]
        %v252 = vlaneseq
        %v253 = vshrl.u32 %v252, 7
        %v254 = vsub.s32 0, %v253
        %v255 = vrot.slane %v250, %v254
        %v265 = vunpack.c.l.b16 %v237
        %v266 = vunpack.c.l.b16 %v238
        %v267 = vunpack.c.l.b16 %v239
        %v268 = vunpack.c.l.b16 %v240
        %v269 = vunpack.c.l.b16 %v241
        %v270 = vunpack.c.l.b16 %v242
        %v271 = vunpack.c.l.b16 %v243
        %v272 = vunpack.c.l.b16 %v244
        %v273 = vpack.c.b16 %v266, %v265
        %v274 = vpack.c.b16 %v268, %v267
        %v275 = vpack.c.b16 %v270, %v269
        %v276 = vpack.c.b16 %v272, %v271
        %v282 = vunpack.c.l.b16 %v245
        %v283 = vunpack.c.l.b16 %v246
        %v284 = vunpack.c.l.b16 %v247
        %v285 = vunpack.c.l.b16 %v248
        %v286 = vunpack.c.l.b16 %v249
        %v287 = vpack.c.b16 %v283, %v282
        %v288 = vpack.c.b16 %v285, %v284
        %v289 = vpack.c.b16 %v286, %v286
        %vm292 = vcmask 293888
        %v294 = vsel %vm292, %v273, 0
        %v297 = vsel %vm292, %v274, 0
        %v300 = vsel %vm292, %v275, 0
        %v303 = vsel %vm292, %v276, 0
        %vm305 = vcmask 1041408
        %v307 = vsel %vm305, %v289, 0
        %309 = vmatprep.subr.bf16.mxu0 0
        %310 = vmatpush1.bf16.msra.mxu0 %v287
        %311 = vmatprep.subr.bf16.mxu0 0
        %312 = vmatpush1.bf16.msra.mxu0 %v288
        %313 = vmatprep.subr.bf16.mxu0 0
        %314 = vmatpush1.bf16.msra.mxu0 %v307
        %315 = vmatprep.subr.bf16.mxu0 0
        %316 = vmatpush1.bf16.msra.mxu0 0
        %317 = vmatprep.subr.bf16.mxu0 0
        %318 = vmatpush1.bf16.msra.mxu0 0
        %319 = vmatprep.subr.bf16.mxu0 0
        %320 = vmatpush1.bf16.msra.mxu0 0
        %321 = vmatprep.subr.bf16.mxu0 0
        %322 = vmatpush1.bf16.msra.mxu0 0
        %323 = vmatprep.subr.bf16.mxu0 0
        %324 = vmatpush1.bf16.msra.mxu0 0
        %325 = vmatprep.subr.bf16.mxu0 0
        %326 = vmatpush1.bf16.msra.mxu0 0
        %327 = vmatprep.subr.bf16.mxu0 0
        %328 = vmatpush1.bf16.msra.mxu0 0
        %329 = vmatprep.subr.bf16.mxu0 0
        %330 = vmatpush1.bf16.msra.mxu0 0
        %331 = vmatprep.subr.bf16.mxu0 0
        %332 = vmatpush1.bf16.msra.mxu0 0
        %333 = vmatprep.subr.bf16.mxu0 0
        %334 = vmatpush1.bf16.msra.mxu0 0
        %335 = vmatprep.subr.bf16.mxu0 0
        %336 = vmatpush1.bf16.msra.mxu0 0
        %337 = vmatprep.subr.bf16.mxu0 0
        %338 = vmatpush1.bf16.msra.mxu0 0
        %339 = vmatprep.subr.bf16.mxu0 0
        %340 = vmatpush1.bf16.msra.mxu0 0
        %341 = vmatprep.mubr.bf16.mxu0 0
        %342 = vmatmul.mubr.bf16.gmra.mrb[0].mxu0 %v294
        %v343 = vpop.f32.mrb[0].mxu0
        %v344 = vadd.f32 %v255, %v343
        %v345 = vpop.f32.mrb[0].mxu0
        %v346 = vpop.f32.mrb[0].mxu0
        %v347 = vadd.f32 %v255, %v346
        %v348 = vpop.f32.mrb[0].mxu0
        %349 = vmatprep.mubr.bf16.mxu0 0
        %350 = vmatmul.mubr.bf16.gmra.mrb[0].mxu0 %v297
        %v351 = vpop.f32.mrb[0].mxu0
        %v352 = vadd.f32 %v255, %v351
        %v353 = vpop.f32.mrb[0].mxu0
        %v354 = vpop.f32.mrb[0].mxu0
        %v355 = vadd.f32 %v255, %v354
        %v356 = vpop.f32.mrb[0].mxu0
        %357 = vmatprep.mubr.bf16.mxu0 0
        %358 = vmatmul.mubr.bf16.gmra.mrb[0].mxu0 %v300
        %v359 = vpop.f32.mrb[0].mxu0
        %v360 = vadd.f32 %v255, %v359
        %v361 = vpop.f32.mrb[0].mxu0
        %v362 = vpop.f32.mrb[0].mxu0
        %v363 = vadd.f32 %v255, %v362
        %v364 = vpop.f32.mrb[0].mxu0
        %365 = vmatprep.mubr.bf16.mxu0 0
        %366 = vmatmul.mubr.bf16.gmra.mrb[0].mxu0 %v303
        %v367 = vpop.f32.mrb[0].mxu0
        %v368 = vadd.f32 %v255, %v367
        %v369 = vpop.f32.mrb[0].mxu0
        %v370 = vpop.f32.mrb[0].mxu0
        %v371 = vadd.f32 %v255, %v370
        %v372 = vpop.f32.mrb[0].mxu0
        %373 = vdwg.mxu0
        %v374 = vmax.f32 %v344, 0.0
        %v375 = vmax.f32 %v347, 0.0
        %v376 = vmax.f32 %v352, 0.0
        %v377 = vmax.f32 %v355, 0.0
        %v378 = vmax.f32 %v360, 0.0
        %v379 = vmax.f32 %v363, 0.0
        %v380 = vmax.f32 %v368, 0.0
        %v381 = vmax.f32 %v371, 0.0
        %382 = vst [vmem:[%s233] sm:$0xff] %v374
        %383 = vst [vmem:[%s233 + $0x8] sm:$0xff] %v375
        %384 = vst [vmem:[%s233 + $0x10] sm:$0xff] %v376
        %385 = vst [vmem:[%s233 + $0x18] sm:$0xff] %v377
        %386 = vst [vmem:[%s233 + $0x20] sm:$0xff] %v378
        %387 = vst [vmem:[%s233 + $0x28] sm:$0xff] %v379
        %388 = vst [vmem:[%s233 + $0x30] sm:$0xff] %v380
        %389 = vst [vmem:[%s233 + $0x38] sm:$0xff] %v381
        %s390 = sand.u32 %s113, 1
        %s391 = scalar_lea.sflag [#allocation4], %s390
        %s392 = sand.u32 %s113, 1
        %s393 = smul.addr %s392, 64
        %s394 = scalar_lea.vmem [#allocation8], %s393
        // Predicated region
        $region45: #{tpu_custom_call.1} parent=31 // pred_check
          %p395 = pneg %p123
        $region46: #{tpu_custom_call.1} parent=31 // pred_check_branch
          %397 = sbr.rel (%p395) target = $region48
        $region47: #{tpu_custom_call.1} parent=31 // pred_region
          %s398 = smul.u32 8, %s26
          %s400 = ssub.s32 1024, 1024
          %401 = vsyncadd %s391, %s400
          %s402 = smul.addr %s25, 8
          %s403 = sadd.s32 %s398, %s402
          %s404 = smul.addr %s403, 128
          %s405 = scalar_lea.hbm %s3, %s404
          %s406 = sshll.u32 %s394, 4
          %s407 = int_to_ptr.vmem [resolvable:$true] %s406
          %412 = dma.vmem_to_hbm [thread:$0]  %s407, 1024, %s405, %s391, 128, 128, 8
        $region48: #{tpu_custom_call.1} parent=31 // pred_fallthru
          _
      $region32: #{tpu_custom_call.1} parent=5 // pred_fallthru
        _
      %p413 = scmp.le.s32.totalorder 2, %s16
      // Predicated region
      $region49: #{tpu_custom_call.1} parent=5 // pred_check
        %p414 = pneg %p413
      $region50: #{tpu_custom_call.1} parent=5 // pred_check_branch
        %416 = sbr.rel (%p414) target = $region52
      $region51: #{tpu_custom_call.1} parent=5 // pred_region
        %s417 = ssub.s32 %s16, 2
        // Predicated region
        $region53: #{tpu_custom_call.1} parent=51 // pred_check
          %p418 = pneg %p129
        $region54: #{tpu_custom_call.1} parent=51 // pred_check_branch
          %420 = sbr.rel (%p418) target = $region56
        $region55: #{tpu_custom_call.1} parent=51 // pred_region
          %s421 = sand.u32 %s114, 1
          %s422 = scalar_lea.sflag [#allocation4], %s421
          %s423 = sand.u32 %s114, 1
          %s424 = smul.addr %s423, 64
          %s425 = scalar_lea.vmem [#allocation8], %s424
          %426 = dma.done %s422, 1024
        $region56: #{tpu_custom_call.1} parent=51 // pred_fallthru
          _
      $region52: #{tpu_custom_call.1} parent=5 // pred_fallthru
        _
    $region6: #{tpu_custom_call.1} parent=1 // loop_footer
      %s20 = sadd.s32 1, %s16
    $region7: #{tpu_custom_call.1} parent=1 // loop_footer_branch
      %15 = sbr.rel target = $region3
    $region8: #{tpu_custom_call.1} parent=1 // loop_exit
      _
    %427 = vsyncpa [#allocation3], 1
    %s428 = scalar_lea.sflag [#allocation3], 1
    %429 = vsyncpa %s428, 1
    %430 = vsyncpa [#allocation6], 1
    %431 = vsyncpa [#allocation4], 1
    %s432 = scalar_lea.sflag [#allocation4], 1
    %433 = vsyncpa %s432, 1

</llo_original>
